<compile_context>
chip_gen: v7x
topology: tpu7x:2x2x1
jax: 0.10.0
libtpu: 0.0.40
codegen_flags: <defaults>
</compile_context>

<pallas_src>
import functools

import jax
import jax.numpy as jnp
from jax.experimental import pallas as pl
from jax.experimental.pallas import tpu as pltpu

_LANE = 128
_TM_TARGET = 2048              # lane-dense column tile target (measured 512-2048 sweet spot)
_ROW_BLOCK_CAP = 256           # row-block target (multiple of 8)
_VMEM_TILE_BUDGET = 12 * 1024 * 1024   # 4 double-buffered tiles must fit here


def _round_up(x: int, m: int) -> int:
    return (x + m - 1) // m * m


def _pick_row_block(rows: int, cap: int = _ROW_BLOCK_CAP) -> int:
    """Largest multiple-of-8 divisor of `rows` <= cap, else the full row count."""
    if rows <= cap:
        return rows
    for cand in range(cap - cap % 8, 7, -8):
        if rows % cand == 0:
            return cand
    return rows   # no aligned divisor: single (full) row block


def _bn_stats_kernel(x_ref, ssum_ref, ssq_ref, pilot_ref, acc_s, acc_q,
                     *, total_cols, tile_cols):
    """Per-row shifted sum / sum-of-squares, accumulated across column tiles."""
    j = pl.program_id(1)
    nj = pl.num_programs(1)

    @pl.when(j == 0)
    def _():
        # Pilot value (first sample of each row) makes the accumulation shifted,
        # so sumsq stays the same magnitude as the centered M2 (no cancellation).
        pilot_ref[...] = x_ref[:, 0:1].astype(jnp.float32)
        acc_s[...] = jnp.zeros_like(acc_s)
        acc_q[...] = jnp.zeros_like(acc_q)

    x = x_ref[...].astype(jnp.float32)          # (rblk, tm)
    xs = x - pilot_ref[...]                     # broadcast (rblk,1) over lanes

    if total_cols % tile_cols != 0:             # mask the tail tile (no jnp.pad)
        col = jax.lax.broadcasted_iota(jnp.int32, xs.shape, 1) + j * tile_cols
        xs = jnp.where(col < total_cols, xs, 0.0)

    # VPU lane-slice accumulation into a (rblk, 128) partial; keeps the
    # steady-state iteration off the XLU (cross-lane reduce only at the end).
    s_acc = acc_s[...]
    q_acc = acc_q[...]
    for k in range(tile_cols // _LANE):
        sl = xs[:, k * _LANE:(k + 1) * _LANE]
        s_acc = s_acc + sl
        q_acc = q_acc + sl * sl
    acc_s[...] = s_acc
    acc_q[...] = q_acc

    @pl.when(j == nj - 1)
    def _():
        ssum_ref[...] = jnp.sum(acc_s[...], axis=-1, keepdims=True)
        ssq_ref[...] = jnp.sum(acc_q[...], axis=-1, keepdims=True)


def _bn_prelu_apply_kernel(params_ref, x_ref, o_ref):
    """y = x*scale + shift;  out = y if y >= 0 else slope*y (per row/channel)."""
    p = params_ref[...]                         # (3, rblk, 1) float32, resident
    scale, shift, slope = p[0], p[1], p[2]      # each (rblk, 1)
    x = x_ref[...].astype(jnp.float32)
    y = x * scale + shift
    o_ref[...] = jnp.where(y >= 0.0, y, slope * y).astype(o_ref.dtype)


def bn_prelu(x: jax.Array,
             gamma: jax.Array,
             beta: jax.Array,
             alpha: jax.Array,
             eps: float = 1e-3) -> jax.Array:
    """BatchNorm2d (training-mode batch stats, eps) followed by per-channel PReLU.

    x: (N, C, H, W); gamma/beta/alpha: (C,).
    """
    n, c, h, w = x.shape
    rows = n * c
    m = h * w

    # Zero-copy channel-plane layout: each row is one contiguous (n, c) plane.
    x2d = x.reshape(rows, m)
    # TODO(synk): for tiny spatial extents (h*w << 128 lanes) a (C, N*H*W)
    # relayout would be lane-denser; not needed for typical DMANet sizes.

    itemsize = jnp.dtype(x.dtype).itemsize
    rblk = _pick_row_block(rows)
    tm = min(_TM_TARGET, _round_up(m, _LANE))
    # Keep double-buffered pass-2 tiles (2x in + 2x out) inside the smallest
    # scoped-VMEM default across generations (v5e 16 MiB / v7x 32 MiB).
    while 4 * rblk * tm * itemsize > _VMEM_TILE_BUDGET and tm > _LANE:
        tm = max(_LANE, tm // 2)

    num_i = rows // rblk
    num_j = pl.cdiv(m, tm)
    grid = (num_i, num_j)

    # ---- Pass 1: per-row shifted sum / sumsq (accumulator pattern) ----------
    stats_cost = pl.CostEstimate(
        flops=4 * x.size, transcendentals=0,
        bytes_accessed=x.size * itemsize + 3 * rows * 4)
    ssum, ssq, pilot = pl.pallas_call(
        functools.partial(_bn_stats_kernel, total_cols=m, tile_cols=tm),
        out_shape=(jax.ShapeDtypeStruct((rows, 1), jnp.float32),) * 3,
        grid=grid,
        in_specs=[pl.BlockSpec((rblk, tm), lambda i, j: (i, j))],
        out_specs=(pl.BlockSpec((rblk, 1), lambda i, j: (i, 0)),) * 3,
        scratch_shapes=[pltpu.VMEM((rblk, _LANE), jnp.float32),
                        pltpu.VMEM((rblk, _LANE), jnp.float32)],
        compiler_params=pltpu.CompilerParams(
            dimension_semantics=("parallel", "arbitrary")),
        cost_estimate=stats_cost,
    )(x2d)

    # ---- Host-side fold: per-row (mean, M2) -> per-channel mean/var (Chan) --
    m_row = float(m)
    mean_r = pilot + ssum / m_row                     # (rows, 1) per-plane mean
    m2_r = ssq - ssum * ssum / m_row                  # per-plane sum((x-mean_r)^2)
    mean_nc = mean_r.reshape(n, c)
    m2_nc = m2_r.reshape(n, c)
    mean_c = jnp.mean(mean_nc, axis=0)                              # (c,)
    m2_c = jnp.sum(m2_nc + m_row * (mean_nc - mean_c) ** 2, axis=0)
    var_c = jnp.maximum(m2_c / (n * m_row), 0.0)      # biased, like torch fwd
    inv_std = jax.lax.rsqrt(var_c + eps)
    scale_c = gamma.astype(jnp.float32) * inv_std
    shift_c = beta.astype(jnp.float32) - mean_c * scale_c
    slope_c = alpha.astype(jnp.float32)

    # Single packed param buffer, tiled to the N*C rows: (3, rows, 1).
    params = jnp.stack([scale_c, shift_c, slope_c], axis=0)         # (3, c)
    params = jnp.broadcast_to(params[:, None, :], (3, n, c)).reshape(3, rows, 1)

    # ---- Pass 2: fused normalize + PReLU, fully parallel grid ---------------
    apply_cost = pl.CostEstimate(
        flops=4 * x.size, transcendentals=0,
        bytes_accessed=2 * x.size * itemsize + 3 * rows * 4)
    out2d = pl.pallas_call(
        _bn_prelu_apply_kernel,
        out_shape=jax.ShapeDtypeStruct((rows, m), x.dtype),
        grid=grid,
        in_specs=[pl.BlockSpec((3, rblk, 1), lambda i, j: (0, i, 0)),   # params (resident)
                  pl.BlockSpec((rblk, tm), lambda i, j: (i, j))],       # x tile
        out_specs=pl.BlockSpec((rblk, tm), lambda i, j: (i, j)),
        compiler_params=pltpu.CompilerParams(
            dimension_semantics=("parallel", "parallel")),
        cost_estimate=apply_cost,
    )(params, x2d)

    # Zero-copy back to NCHW (row r == plane (n, c)).
    return out2d.reshape(n, c, h, w)


if __name__ == "__main__":
    key = jax.random.PRNGKey(0)
    kx, kg, kb, ka = jax.random.split(key, 4)

    n, c, h, w = 2, 4, 16, 16
    eps = 1e-3
    x = jax.random.normal(kx, (n, c, h, w), dtype=jnp.float32) * 2.0 + 0.5
    gamma = 1.0 + 0.1 * jax.random.normal(kg, (c,), dtype=jnp.float32)
    beta = 0.1 * jax.random.normal(kb, (c,), dtype=jnp.float32)
    alpha = jax.random.uniform(ka, (c,), dtype=jnp.float32,
                               minval=0.05, maxval=0.5)  # PReLU default is 0.25

    y = bn_prelu(x, gamma, beta, alpha, eps=eps)
    y = jax.block_until_ready(y)

    # Pure-JAX reference (same math as torch BatchNorm2d(train) + PReLU).
    mean_ref = jnp.mean(x, axis=(0, 2, 3), keepdims=True)
    var_ref = jnp.var(x, axis=(0, 2, 3), keepdims=True)  # biased, like torch fwd
    xn = (x - mean_ref) * jax.lax.rsqrt(var_ref + eps)
    bn = xn * gamma.reshape(1, c, 1, 1) + beta.reshape(1, c, 1, 1)
    a4 = alpha.reshape(1, c, 1, 1)
    y_ref = jnp.where(bn >= 0.0, bn, a4 * bn)

    assert y.shape == x.shape and y.dtype == x.dtype
    max_err = float(jnp.max(jnp.abs(y - y_ref)))
    assert max_err < 1e-4, f"max abs err {max_err}"
    print("KERNEL_OK")
</pallas_src>

<mosaic_0001>
module attributes {stable_mosaic.version = 11 : i64} {
  func.func @_bn_stats_kernel(%arg0: i32, %arg1: i32, %arg2: memref<8x256xf32, #tpu.memory_space<vmem>>, %arg3: memref<8x1xf32, #tpu.memory_space<vmem>>, %arg4: memref<8x1xf32, #tpu.memory_space<vmem>>, %arg5: memref<8x1xf32, #tpu.memory_space<vmem>>, %arg6: memref<8x128xf32, #tpu.memory_space<vmem>>, %arg7: memref<8x128xf32, #tpu.memory_space<vmem>>) attributes {dimension_semantics = [#tpu.dimension_semantics<parallel>, #tpu.dimension_semantics<arbitrary>], iteration_bounds = array<i64: 1, 1>, scalar_prefetch = 0 : i64, scratch_operands = 2 : i64, tpu.core_type = #tpu.core_type<tc>, window_params = [{transform_indices = @transform_0, window_bounds = array<i64: 8, 256>}, {transform_indices = @transform_1, window_bounds = array<i64: 8, 1>}, {transform_indices = @transform_2, window_bounds = array<i64: 8, 1>}, {transform_indices = @transform_3, window_bounds = array<i64: 8, 1>}]} {
    %c0_i32 = arith.constant 0 : i32
    %0 = arith.cmpi eq, %arg1, %c0_i32 : i32
    %1 = arith.extui %0 : i1 to i32
    %c0_i32_0 = arith.constant 0 : i32
    %2 = arith.cmpi ne, %1, %c0_i32_0 : i32
    scf.if %2 {
      %c0_14 = arith.constant 0 : index
      %c0_15 = arith.constant 0 : index
      %22 = vector.load %arg2[%c0_14, %c0_15] : memref<8x256xf32, #tpu.memory_space<vmem>>, vector<8x1xf32>
      %c0_16 = arith.constant 0 : index
      %c0_17 = arith.constant 0 : index
      %23 = vector.load %arg5[%c0_16, %c0_17] : memref<8x1xf32, #tpu.memory_space<vmem>>, vector<8x1xf32>
      tpu.vector_store %arg5[%c0_16, %c0_17], %22 {strides = array<i32>} : memref<8x1xf32, #tpu.memory_space<vmem>>, vector<8x1xf32>,
      %cst = arith.constant 0.000000e+00 : f32
      %24 = vector.broadcast %cst : f32 to vector<8x128xf32>
      %c0_18 = arith.constant 0 : index
      %c0_19 = arith.constant 0 : index
      %25 = vector.load %arg6[%c0_18, %c0_19] : memref<8x128xf32, #tpu.memory_space<vmem>>, vector<8x128xf32>
      tpu.vector_store %arg6[%c0_18, %c0_19], %24 {strides = array<i32>} : memref<8x128xf32, #tpu.memory_space<vmem>>, vector<8x128xf32>,
      %cst_20 = arith.constant 0.000000e+00 : f32
      %26 = vector.broadcast %cst_20 : f32 to vector<8x128xf32>
      %c0_21 = arith.constant 0 : index
      %c0_22 = arith.constant 0 : index
      %27 = vector.load %arg7[%c0_21, %c0_22] : memref<8x128xf32, #tpu.memory_space<vmem>>, vector<8x128xf32>
      tpu.vector_store %arg7[%c0_21, %c0_22], %26 {strides = array<i32>} : memref<8x128xf32, #tpu.memory_space<vmem>>, vector<8x128xf32>,
    } else {
    }
    %c0 = arith.constant 0 : index
    %c0_1 = arith.constant 0 : index
    %3 = vector.load %arg2[%c0, %c0_1] : memref<8x256xf32, #tpu.memory_space<vmem>>, vector<8x256xf32>
    %c0_2 = arith.constant 0 : index
    %c0_3 = arith.constant 0 : index
    %4 = vector.load %arg5[%c0_2, %c0_3] : memref<8x1xf32, #tpu.memory_space<vmem>>, vector<8x1xf32>
    %5 = vector.broadcast %4 : vector<8x1xf32> to vector<8x256xf32>
    %6 = arith.subf %3, %5 : vector<8x256xf32>
    %c0_4 = arith.constant 0 : index
    %c0_5 = arith.constant 0 : index
    %7 = vector.load %arg6[%c0_4, %c0_5] : memref<8x128xf32, #tpu.memory_space<vmem>>, vector<8x128xf32>
    %c0_6 = arith.constant 0 : index
    %c0_7 = arith.constant 0 : index
    %8 = vector.load %arg7[%c0_6, %c0_7] : memref<8x128xf32, #tpu.memory_space<vmem>>, vector<8x128xf32>
    %9 = vector.extract_strided_slice %6 {offsets = [0, 0], sizes = [8, 128], strides = [1, 1]} : vector<8x256xf32> to vector<8x128xf32>
    %10 = arith.addf %7, %9 : vector<8x128xf32>
    %11 = arith.mulf %9, %9 : vector<8x128xf32>
    %12 = arith.addf %8, %11 : vector<8x128xf32>
    %13 = vector.extract_strided_slice %6 {offsets = [0, 128], sizes = [8, 128], strides = [1, 1]} : vector<8x256xf32> to vector<8x128xf32>
    %14 = arith.addf %10, %13 : vector<8x128xf32>
    %15 = arith.mulf %13, %13 : vector<8x128xf32>
    %16 = arith.addf %12, %15 : vector<8x128xf32>
    %c0_8 = arith.constant 0 : index
    %c0_9 = arith.constant 0 : index
    %17 = vector.load %arg6[%c0_8, %c0_9] : memref<8x128xf32, #tpu.memory_space<vmem>>, vector<8x128xf32>
    tpu.vector_store %arg6[%c0_8, %c0_9], %14 {strides = array<i32>} : memref<8x128xf32, #tpu.memory_space<vmem>>, vector<8x128xf32>,
    %c0_10 = arith.constant 0 : index
    %c0_11 = arith.constant 0 : index
    %18 = vector.load %arg7[%c0_10, %c0_11] : memref<8x128xf32, #tpu.memory_space<vmem>>, vector<8x128xf32>
    tpu.vector_store %arg7[%c0_10, %c0_11], %16 {strides = array<i32>} : memref<8x128xf32, #tpu.memory_space<vmem>>, vector<8x128xf32>,
    %c0_i32_12 = arith.constant 0 : i32
    %19 = arith.cmpi eq, %arg1, %c0_i32_12 : i32
    %20 = arith.extui %19 : i1 to i32
    %c0_i32_13 = arith.constant 0 : i32
    %21 = arith.cmpi ne, %20, %c0_i32_13 : i32
    scf.if %21 {
      %c0_14 = arith.constant 0 : index
      %c0_15 = arith.constant 0 : index
      %22 = vector.load %arg6[%c0_14, %c0_15] : memref<8x128xf32, #tpu.memory_space<vmem>>, vector<8x128xf32>
      %cst = arith.constant dense<0.000000e+00> : vector<8xf32>
      %23 = vector.multi_reduction <add>, %22, %cst [1] : vector<8x128xf32> to vector<8xf32>
      %24 = vector.shape_cast %23 : vector<8xf32> to vector<8x1xf32>
      %c0_16 = arith.constant 0 : index
      %c0_17 = arith.constant 0 : index
      %25 = vector.load %arg3[%c0_16, %c0_17] : memref<8x1xf32, #tpu.memory_space<vmem>>, vector<8x1xf32>
      tpu.vector_store %arg3[%c0_16, %c0_17], %24 {strides = array<i32>} : memref<8x1xf32, #tpu.memory_space<vmem>>, vector<8x1xf32>,
      %c0_18 = arith.constant 0 : index
      %c0_19 = arith.constant 0 : index
      %26 = vector.load %arg7[%c0_18, %c0_19] : memref<8x128xf32, #tpu.memory_space<vmem>>, vector<8x128xf32>
      %cst_20 = arith.constant dense<0.000000e+00> : vector<8xf32>
      %27 = vector.multi_reduction <add>, %26, %cst_20 [1] : vector<8x128xf32> to vector<8xf32>
      %28 = vector.shape_cast %27 : vector<8xf32> to vector<8x1xf32>
      %c0_21 = arith.constant 0 : index
      %c0_22 = arith.constant 0 : index
      %29 = vector.load %arg4[%c0_21, %c0_22] : memref<8x1xf32, #tpu.memory_space<vmem>>, vector<8x1xf32>
      tpu.vector_store %arg4[%c0_21, %c0_22], %28 {strides = array<i32>} : memref<8x1xf32, #tpu.memory_space<vmem>>, vector<8x1xf32>,
    } else {
    }
    return
  }
  func.func @transform_0(%arg0: i32, %arg1: i32) -> (i32, i32) {
    %c0_i32 = arith.constant 0 : i32
    return %arg0, %arg1 : i32, i32
  }
  func.func @transform_1(%arg0: i32, %arg1: i32) -> (i32, i32) {
    %c0_i32 = arith.constant 0 : i32
    %c0_i32_0 = arith.constant 0 : i32
    return %arg0, %c0_i32 : i32, i32
  }
  func.func @transform_2(%arg0: i32, %arg1: i32) -> (i32, i32) {
    %c0_i32 = arith.constant 0 : i32
    %c0_i32_0 = arith.constant 0 : i32
    return %arg0, %c0_i32 : i32, i32
  }
  func.func @transform_3(%arg0: i32, %arg1: i32) -> (i32, i32) {
    %c0_i32 = arith.constant 0 : i32
    %c0_i32_0 = arith.constant 0 : i32
    return %arg0, %c0_i32 : i32, i32
  }
}

</mosaic_0001>

<llo_original>
// kernel: tpu_custom_call.1
$region0: #{tpu_custom_call.1}
  #allocation0 [shape = 'u32[]', space=smem, size = 0x4, offset = 0x4, fixed_abs, tag = 'smem constant byte address 0x4 - core index']
  #allocation1 [shape = 'u32[144,128]{1,0:T(1,128)}', space=vmem, size = 0x12000, scoped, tag = 'internal scratch']
  #allocation2 [shape = 'f32[8,128]{1,0:T(8,128)}', space=vmem, size = 0x1000, scoped, tag = 'scratch operand']
  #allocation3 [shape = 'f32[8,128]{1,0:T(8,128)}', space=vmem, size = 0x1000, scoped, tag = 'scratch operand']
  %s0 = inlined_call_operand.hbm [shape: f32[8,256], index: 0, kind: input, shape index: {}]
  %s1 = inlined_call_operand.vmem [shape: f32[8,1], index: 1, kind: output, shape index: {0}]
  %s2 = inlined_call_operand.vmem [shape: f32[8,1], index: 2, kind: output, shape index: {1}]
  %s3 = inlined_call_operand.vmem [shape: f32[8,1], index: 3, kind: output, shape index: {2}]
  %4 = xla_tuple %s1, %s2, %s3
  %s5 = sld [smem:[#allocation0]]
  $region42: #{tpu_custom_call.1} parent=0
    _
  %s7 = ssub.s32 1, %s5
  %s8 = scalar_select 0, %s7, %s5
  $region1: #{tpu_custom_call.1} parent=0
    #allocation4 [shape = 'u8[8192]{0}', space=vmem, size = 0x2000, scoped, tag = 'input window, operand 0, single buffered']
    #allocation5 [shape = 's32[1]{0}', space=sflag, size = 0x4, scoped, tag = 'scoped memory for tpu_custom_call.1']
    %9 = vsyncpa [#allocation5], 0
    // Predicated region
    $region2: #{tpu_custom_call.1} parent=1 // pred_check
      _
    $region3: #{tpu_custom_call.1} parent=1 // pred_check_branch
      %11 = sbr.rel (0) target = $region5
    $region4: #{tpu_custom_call.1} parent=1 // pred_region
      %s13 = ssub.s32 256, 256
      %14 = vsyncadd [#allocation5], %s13
      %s16 = sshll.u32 [#allocation4], 4
      %s17 = int_to_ptr.vmem [resolvable:$true] %s16
      %19 = dma.hbm_to_vmem [thread:$0]  %s0, 256, %s17, [#allocation5]
    $region5: #{tpu_custom_call.1} parent=1 // pred_fallthru
      _
    // Predicated region
    $region6: #{tpu_custom_call.1} parent=1 // pred_check
      _
    $region7: #{tpu_custom_call.1} parent=1 // pred_check_branch
      %21 = sbr.rel (0) target = $region9
    $region8: #{tpu_custom_call.1} parent=1 // pred_region
      %22 = dma.done [#allocation5], 256
    $region9: #{tpu_custom_call.1} parent=1 // pred_fallthru
      _
    %p23 = scmp.eq.s32.totalorder 0, 0
    // Predicated region
    $region10: #{tpu_custom_call.1} parent=1 // pred_check
      %p24 = pneg %p23
    $region11: #{tpu_custom_call.1} parent=1 // pred_check_branch
      %26 = sbr.rel (%p24) target = $region13
    $region12: #{tpu_custom_call.1} parent=1 // pred_region
      %v27 = vld [vmem:[#allocation4] sm:$0xff]
      %vm28 = vcmask 7168
      %29 = vst.msk [vmem:[%s3] sm:$0xff] %vm28, %v27
      %30 = vst [vmem:[#allocation2] sm:$0xff] 0.0
      %31 = vst [vmem:[#allocation3] sm:$0xff] 0.0
    $region13: #{tpu_custom_call.1} parent=1 // pred_fallthru
      _
    %v32 = vld [vmem:[#allocation4] sm:$0xff]
    %v33 = vld [vmem:[#allocation4 + $0x8] sm:$0xff]
    %v34 = vld [vmem:[%s3] sm:$0xff]
    %36 = vset.pattern.permute.xlu0 0
    %37 = vperm.xlu0 %36, %v34
    %v38 = vpop.permute.xlu0 %37
    %v40 = vsub.f32 %v32, %v38
    %v41 = vsub.f32 %v33, %v38
    %v42 = vld [vmem:[#allocation2] sm:$0xff]
    %v43 = vld [vmem:[#allocation3] sm:$0xff]
    %v44 = vadd.f32 %v42, %v40
    %v45 = vmul.f32 %v40, %v40
    %v46 = vadd.f32 %v43, %v45
    %v47 = vadd.f32 %v44, %v41
    %v48 = vmul.f32 %v41, %v41
    %v49 = vadd.f32 %v46, %v48
    %50 = vst [vmem:[#allocation2] sm:$0xff] %v47
    %51 = vst [vmem:[#allocation3] sm:$0xff] %v49
    // Predicated region
    $region14: #{tpu_custom_call.1} parent=1 // pred_check
      %p52 = pneg %p23
    $region15: #{tpu_custom_call.1} parent=1 // pred_check_branch
      %54 = sbr.rel (%p52) target = $region17
    $region16: #{tpu_custom_call.1} parent=1 // pred_region
      %v55 = vld [vmem:[#allocation2] sm:$0xff]
      %56 = vadd.xlane.f32.xlu0 %v55
      %v57 = vpop.xlane.xlu0 %56
      %vm58 = vcmask 7168
      %59 = vst.msk [vmem:[%s1] sm:$0xff] %vm58, %v57
      %v60 = vld [vmem:[#allocation3] sm:$0xff]
      %61 = vadd.xlane.f32.xlu0 %v60
      %v62 = vpop.xlane.xlu0 %61
      %63 = vst.msk [vmem:[%s2] sm:$0xff] %vm58, %v62
    $region17: #{tpu_custom_call.1} parent=1 // pred_fallthru
      _
    // Predicated region
    $region18: #{tpu_custom_call.1} parent=1 // pred_check
      _
    $region19: #{tpu_custom_call.1} parent=1 // pred_check_branch
      %65 = sbr.rel (0) target = $region21
    $region20: #{tpu_custom_call.1} parent=1 // pred_region
      _
    $region21: #{tpu_custom_call.1} parent=1 // pred_fallthru
      _
    // Predicated region
    $region22: #{tpu_custom_call.1} parent=1 // pred_check
      _
    $region23: #{tpu_custom_call.1} parent=1 // pred_check_branch
      %67 = sbr.rel (0) target = $region25
    $region24: #{tpu_custom_call.1} parent=1 // pred_region
      _
    $region25: #{tpu_custom_call.1} parent=1 // pred_fallthru
      _
    // Predicated region
    $region26: #{tpu_custom_call.1} parent=1 // pred_check
      _
    $region27: #{tpu_custom_call.1} parent=1 // pred_check_branch
      %69 = sbr.rel (0) target = $region29
    $region28: #{tpu_custom_call.1} parent=1 // pred_region
      _
    $region29: #{tpu_custom_call.1} parent=1 // pred_fallthru
      _
    // Predicated region
    $region30: #{tpu_custom_call.1} parent=1 // pred_check
      _
    $region31: #{tpu_custom_call.1} parent=1 // pred_check_branch
      %71 = sbr.rel (0) target = $region33
    $region32: #{tpu_custom_call.1} parent=1 // pred_region
      _
    $region33: #{tpu_custom_call.1} parent=1 // pred_fallthru
      _
    // Predicated region
    $region34: #{tpu_custom_call.1} parent=1 // pred_check
      _
    $region35: #{tpu_custom_call.1} parent=1 // pred_check_branch
      %73 = sbr.rel (0) target = $region37
    $region36: #{tpu_custom_call.1} parent=1 // pred_region
      _
    $region37: #{tpu_custom_call.1} parent=1 // pred_fallthru
      _
    // Predicated region
    $region38: #{tpu_custom_call.1} parent=1 // pred_check
      _
    $region39: #{tpu_custom_call.1} parent=1 // pred_check_branch
      %75 = sbr.rel (0) target = $region41
    $region40: #{tpu_custom_call.1} parent=1 // pred_region
      _
    $region41: #{tpu_custom_call.1} parent=1 // pred_fallthru
      _
    %76 = vsyncpa [#allocation5], 1

</llo_original>
